<compile_context>
chip_gen: v6e
topology: v6e:2x2x1
jax: 0.10.0
libtpu: 0.0.40
codegen_flags: <defaults>
</compile_context>

<pallas_src>
import jax
import jax.numpy as jnp
from jax.experimental import pallas as pl
from jax.experimental.pallas import tpu as pltpu

_MIB = 1 << 20
# Double-buffered working-set budget: comfortably inside v5e's 16 MiB scoped
# default once vmem_limit_bytes is raised, v6e/v7x's 32 MiB default, and well
# under v7x's 64 MiB physical VMEM per TensorCore.
_DEFAULT_VMEM_BUDGET = 24 * _MIB


def _round_up(x, m):
    return ((x + m - 1) // m) * m


def _pick_divisor_tile(total, max_tile, quantum):
    """Largest multiple of `quantum` <= min(max_tile, total) that divides `total`.

    `total` must be a multiple of `quantum` (so `quantum` always works).
    """
    t = max(quantum, min(max_tile, total))
    t = (t // quantum) * quantum
    while total % t:
        t -= quantum
    return t


def _vmem_limit(working_set_bytes):
    # working set (already double-buffered) + headroom for Mosaic internals.
    return int(min(max(working_set_bytes + 8 * _MIB, 16 * _MIB), 40 * _MIB))


# --------------------------------------------------------------------------
# Fast path: full-K tiles, 2-D (M, N) grid, no accumulator, no epilogue branch.
# --------------------------------------------------------------------------
def _linear_relu_kernel(x_ref, w_ref, b_ref, o_ref):
    """x:(tm,K)  w:(K,tn)  b:(1,tn)  o:(tm,tn)."""
    y = jnp.dot(x_ref[...], w_ref[...], preferred_element_type=jnp.float32)
    o_ref[...] = jnp.maximum(y + b_ref[...], 0.0).astype(o_ref.dtype)


# --------------------------------------------------------------------------
# Fallback: (M, N, K) grid for weights too large to keep K-resident in VMEM.
# Accumulates directly into the K-resident o_ref (valid because out dtype is
# f32; reinstate a f32 VMEM scratch if a sub-f32 output dtype is ever used).
# --------------------------------------------------------------------------
def _linear_relu_mnk_kernel(x_ref, w_ref, b_ref, o_ref):
    k = pl.program_id(2)
    part = jnp.dot(x_ref[...], w_ref[...], preferred_element_type=jnp.float32)

    @pl.when(k == 0)
    def _():
        o_ref[...] = part.astype(o_ref.dtype)

    @pl.when(k > 0)
    def _():
        o_ref[...] += part.astype(o_ref.dtype)

    @pl.when(k == pl.num_programs(2) - 1)
    def _():
        o_ref[...] = jnp.maximum(o_ref[...] + b_ref[...], 0.0).astype(o_ref.dtype)


def layer_net_forward(x, weight, bias, *, tm_max=512, tn_max=512, tk_max=1024,
                      vmem_budget_bytes=_DEFAULT_VMEM_BUDGET, force_mnk=False):
    """Pallas equivalent of LayerNet.forward: relu(x @ weight.T + bias).

    x:      (B, input_dim)            float32
    weight: (hidden_dim, input_dim)   PyTorch nn.Linear layout
    bias:   (hidden_dim,)
    """
    B, Din = x.shape
    Dhid, Din_w = weight.shape
    assert Din == Din_w, "weight in_features must match x feature dim"
    assert bias.shape == (Dhid,)
    out_dtype = x.dtype
    itemsize = jnp.dtype(out_dtype).itemsize

    Np = _round_up(Dhid, 128)  # lane-dense output / weight N dim

    # One-time weight transpose to (K, N): the kernel's dot is a plain
    # (tm,K)@(K,tn) contraction -> no per-tile XLU transpose in the inner loop.
    wt = weight.T                                            # (Din, Dhid)
    wt_p = wt if Np == Dhid else jnp.pad(wt, ((0, 0), (0, Np - Dhid)))
    b_p = (bias if Np == Dhid else jnp.pad(bias, (0, Np - Dhid))).reshape(1, Np)

    # ---------------- fast-path tile selection -----------------------------
    tm = B if B <= tm_max else (tm_max // 8) * 8
    gm = pl.cdiv(B, tm)
    if gm == 1 and 128 < Np <= tn_max:
        # Split N into >=2 tiles so both v7x TensorCores get work even when the
        # whole batch fits in one M tile.
        tn = _round_up(pl.cdiv(Np, 2), 128)
    else:
        tn = min(tn_max, Np)

    def _fast_ws(tm_, tn_):  # double-buffered VMEM working set of one step
        return 2 * itemsize * (tm_ * Din + Din * tn_ + tn_ + tm_ * tn_)

    while _fast_ws(tm, tn) > vmem_budget_bytes and tn > 128:
        tn = _round_up(tn // 2, 128)
    while _fast_ws(tm, tn) > vmem_budget_bytes and tm > 8:
        tm = max(8, (tm // 2 // 8) * 8)
    gm, gn = pl.cdiv(B, tm), pl.cdiv(Np, tn)

    if not force_mnk and _fast_ws(tm, tn) <= vmem_budget_bytes:
        ws = _fast_ws(tm, tn)
        w_reads = gm if gn > 1 else 1  # W block index constant when gn == 1
        cost = pl.CostEstimate(
            flops=2 * B * Np * Din,
            transcendentals=0,
            bytes_accessed=itemsize * (B * Din + w_reads * Din * Np + Np + B * Np),
        )
        out = pl.pallas_call(
            _linear_relu_kernel,
            out_shape=jax.ShapeDtypeStruct((B, Np), out_dtype),
            grid=(gm, gn),
            in_specs=[
                pl.BlockSpec((tm, Din), lambda i, j: (i, 0)),   # x (K resident)
                pl.BlockSpec((Din, tn), lambda i, j: (0, j)),   # W.T tile
                pl.BlockSpec((1, tn), lambda i, j: (0, j)),     # bias tile
            ],
            out_specs=pl.BlockSpec((tm, tn), lambda i, j: (i, j)),
            compiler_params=pltpu.CompilerParams(
                dimension_semantics=("parallel", "parallel"),
                vmem_limit_bytes=_vmem_limit(ws)),
            cost_estimate=cost,
        )(x, wt_p, b_p)
        return out[:, :Dhid]

    # ---------------- fallback: blocked-K (M, N, K) path --------------------
    Kp = _round_up(Din, 128)
    tk = _pick_divisor_tile(Kp, tk_max, 128)   # divisor of Kp: no K inflation
    tn = _pick_divisor_tile(Np, tn_max, 128)
    tm = B if B <= tm_max else (tm_max // 8) * 8

    def _mnk_ws(tm_, tn_, tk_):
        return 2 * itemsize * (tm_ * tk_ + tk_ * tn_ + tn_ + tm_ * tn_)

    while _mnk_ws(tm, tn, tk) > vmem_budget_bytes and tk > 128:
        tk = _pick_divisor_tile(Kp, tk // 2, 128)
    while _mnk_ws(tm, tn, tk) > vmem_budget_bytes and tn > 128:
        tn = _pick_divisor_tile(Np, tn // 2, 128)
    while _mnk_ws(tm, tn, tk) > vmem_budget_bytes and tm > 8:
        tm = max(8, (tm // 2 // 8) * 8)

    gm, gn, gk = pl.cdiv(B, tm), Np // tn, Kp // tk

    # K tail must be exact zeros (it feeds the accumulation), so pad x along K
    # here only.  M/N tails are handled by masked stores + the final slice.
    xp = x if Kp == Din else jnp.pad(x, ((0, 0), (0, Kp - Din)))
    wt_kp = wt_p if Kp == Din else jnp.pad(wt_p, ((0, Kp - Din), (0, 0)))

    ws = _mnk_ws(tm, tn, tk)
    cost = pl.CostEstimate(
        flops=2 * B * Np * Kp,
        transcendentals=0,
        bytes_accessed=itemsize * (gn * B * Kp + gm * Kp * Np + Np + B * Np),
    )
    out = pl.pallas_call(
        _linear_relu_mnk_kernel,
        out_shape=jax.ShapeDtypeStruct((B, Np), out_dtype),
        grid=(gm, gn, gk),
        in_specs=[
            pl.BlockSpec((tm, tk), lambda i, j, k: (i, k)),   # x tile
            pl.BlockSpec((tk, tn), lambda i, j, k: (k, j)),   # W.T tile
            pl.BlockSpec((1, tn), lambda i, j, k: (0, j)),    # bias tile
        ],
        out_specs=pl.BlockSpec((tm, tn), lambda i, j, k: (i, j)),
        compiler_params=pltpu.CompilerParams(
            dimension_semantics=("parallel", "parallel", "arbitrary"),
            vmem_limit_bytes=_vmem_limit(ws)),
        cost_estimate=cost,
    )(xp, wt_kp, b_p)
    return out[:, :Dhid]


if __name__ == "__main__":
    key = jax.random.PRNGKey(0)
    ks = jax.random.split(key, 9)

    # --- Small shapes implied by the module: Linear(input_dim, hidden_dim) ---
    batch, input_dim, hidden_dim = 8, 32, 64
    bound = 1.0 / jnp.sqrt(jnp.float32(input_dim))
    weight = jax.random.uniform(ks[0], (hidden_dim, input_dim),
                                minval=-bound, maxval=bound, dtype=jnp.float32)
    bias = jax.random.uniform(ks[1], (hidden_dim,),
                              minval=-bound, maxval=bound, dtype=jnp.float32)
    x = jax.random.normal(ks[2], (batch, input_dim), dtype=jnp.float32)

    out = jax.block_until_ready(layer_net_forward(x, weight, bias))
    ref = jnp.maximum(x @ weight.T + bias, 0.0)
    assert out.shape == (batch, hidden_dim)
    assert jnp.allclose(out, ref, atol=1e-5, rtol=1e-5)

    # --- Larger shapes: fast path with >=2 N tiles (megacore-friendly) -------
    B2, D2, H2 = 256, 512, 384
    bound2 = 1.0 / jnp.sqrt(jnp.float32(D2))
    w2 = jax.random.uniform(ks[3], (H2, D2),
                            minval=-bound2, maxval=bound2, dtype=jnp.float32)
    b2 = jax.random.uniform(ks[4], (H2,),
                            minval=-bound2, maxval=bound2, dtype=jnp.float32)
    x2 = jax.random.normal(ks[5], (B2, D2), dtype=jnp.float32)

    out2 = jax.block_until_ready(layer_net_forward(x2, w2, b2))
    ref2 = jnp.maximum(x2 @ w2.T + b2, 0.0)
    assert out2.shape == (B2, H2)
    assert jnp.allclose(out2, ref2, atol=1e-4, rtol=1e-4)

    # --- Exercise the blocked-K fallback path (non-128-multiple K) -----------
    B3, D3, H3 = 96, 640, 256
    bound3 = 1.0 / jnp.sqrt(jnp.float32(D3))
    w3 = jax.random.uniform(ks[6], (H3, D3),
                            minval=-bound3, maxval=bound3, dtype=jnp.float32)
    b3 = jax.random.uniform(ks[7], (H3,),
                            minval=-bound3, maxval=bound3, dtype=jnp.float32)
    x3 = jax.random.normal(ks[8], (B3, D3), dtype=jnp.float32)

    out3 = jax.block_until_ready(
        layer_net_forward(x3, w3, b3, tk_max=256, force_mnk=True))
    ref3 = jnp.maximum(x3 @ w3.T + b3, 0.0)
    assert out3.shape == (B3, H3)
    assert jnp.allclose(out3, ref3, atol=1e-4, rtol=1e-4)

    print("KERNEL_OK")
</pallas_src>

<mosaic_0001>
module attributes {stable_mosaic.version = 11 : i64} {
  func.func @_linear_relu_kernel(%arg0: i32, %arg1: i32, %arg2: memref<8x32xf32, #tpu.memory_space<vmem>>, %arg3: memref<32x128xf32, #tpu.memory_space<vmem>>, %arg4: memref<1x128xf32, #tpu.memory_space<vmem>>, %arg5: memref<8x128xf32, #tpu.memory_space<vmem>>) attributes {dimension_semantics = [#tpu.dimension_semantics<parallel>, #tpu.dimension_semantics<parallel>], iteration_bounds = array<i64: 1, 1>, scalar_prefetch = 0 : i64, scratch_operands = 0 : i64, tpu.core_type = #tpu.core_type<tc>, window_params = [{transform_indices = @transform_0, window_bounds = array<i64: 8, 32>}, {transform_indices = @transform_1, window_bounds = array<i64: 32, 128>}, {transform_indices = @transform_2, window_bounds = array<i64: 1, 128>}, {transform_indices = @transform_3, window_bounds = array<i64: 8, 128>}]} {
    %c0 = arith.constant 0 : index
    %c0_0 = arith.constant 0 : index
    %0 = vector.load %arg2[%c0, %c0_0] : memref<8x32xf32, #tpu.memory_space<vmem>>, vector<8x32xf32>
    %c0_1 = arith.constant 0 : index
    %c0_2 = arith.constant 0 : index
    %1 = vector.load %arg3[%c0_1, %c0_2] : memref<32x128xf32, #tpu.memory_space<vmem>>, vector<32x128xf32>
    %cst = arith.constant dense<0.000000e+00> : vector<8x128xf32>
    %2 = tpu.matmul %0, %1, %cst {dimension_numbers = #tpu.dot_dimension_numbers<[1], [0], [0], [1], [0, 0, 1, 1], [], []>} : vector<8x32xf32>, vector<32x128xf32>, vector<8x128xf32> -> vector<8x128xf32>
    %c0_3 = arith.constant 0 : index
    %c0_4 = arith.constant 0 : index
    %3 = vector.load %arg4[%c0_3, %c0_4] : memref<1x128xf32, #tpu.memory_space<vmem>>, vector<1x128xf32>
    %4 = vector.broadcast %3 : vector<1x128xf32> to vector<8x128xf32>
    %5 = arith.addf %2, %4 : vector<8x128xf32>
    %cst_5 = arith.constant 0.000000e+00 : f32
    %6 = vector.broadcast %cst_5 : f32 to vector<8x128xf32>
    %7 = arith.maximumf %5, %6 : vector<8x128xf32>
    %c0_6 = arith.constant 0 : index
    %c0_7 = arith.constant 0 : index
    %8 = vector.load %arg5[%c0_6, %c0_7] : memref<8x128xf32, #tpu.memory_space<vmem>>, vector<8x128xf32>
    tpu.vector_store %arg5[%c0_6, %c0_7], %7 {strides = array<i32>} : memref<8x128xf32, #tpu.memory_space<vmem>>, vector<8x128xf32>,
    return
  }
  func.func @transform_0(%arg0: i32, %arg1: i32) -> (i32, i32) {
    %c0_i32 = arith.constant 0 : i32
    %c0_i32_0 = arith.constant 0 : i32
    return %arg0, %c0_i32 : i32, i32
  }
  func.func @transform_1(%arg0: i32, %arg1: i32) -> (i32, i32) {
    %c0_i32 = arith.constant 0 : i32
    %c0_i32_0 = arith.constant 0 : i32
    return %c0_i32, %arg1 : i32, i32
  }
  func.func @transform_2(%arg0: i32, %arg1: i32) -> (i32, i32) {
    %c0_i32 = arith.constant 0 : i32
    %c0_i32_0 = arith.constant 0 : i32
    return %c0_i32, %arg1 : i32, i32
  }
  func.func @transform_3(%arg0: i32, %arg1: i32) -> (i32, i32) {
    %c0_i32 = arith.constant 0 : i32
    return %arg0, %arg1 : i32, i32
  }
}

</mosaic_0001>

<llo_original>
// kernel: tpu_custom_call.1
$region0: #{tpu_custom_call.1}
  #allocation0 [shape = 'u32[]', space=smem, size = 0x4, offset = 0x4, fixed_abs, tag = 'smem constant byte address 0x4 - core index']
  #allocation1 [shape = 'u32[144,128]{1,0:T(1,128)}', space=vmem, size = 0x12000, scoped, tag = 'internal scratch']
  %s0 = inlined_call_operand.hbm [shape: f32[8,32], index: 0, kind: input, shape index: {}]
  %s1 = inlined_call_operand.hbm [shape: f32[32,128], index: 1, kind: input, shape index: {}]
  %s2 = inlined_call_operand.vmem [shape: f32[1,128], index: 2, kind: input, shape index: {}]
  %s3 = inlined_call_operand.hbm [shape: f32[8,128], index: 3, kind: output, shape index: {}]
  %s4 = sld [smem:[#allocation0]]
  $region30: #{tpu_custom_call.1} parent=0
    _
  %s6 = ssub.s32 1, %s4
  %s7 = scalar_select 0, %s6, %s4
  $region1: #{tpu_custom_call.1} parent=0
    #allocation2 [shape = 'u8[4096]{0}', space=vmem, size = 0x1000, scoped, tag = 'input window, operand 0, single buffered']
    #allocation3 [shape = 's32[1]{0}', space=sflag, size = 0x4, scoped, tag = 'scoped memory for tpu_custom_call.1']
    #allocation4 [shape = 's32[1]{0}', space=sflag, size = 0x4, scoped, tag = 'scoped memory for tpu_custom_call.1']
    #allocation5 [shape = 'u8[16384]{0}', space=vmem, size = 0x4000, scoped, tag = 'input window, operand 1, single buffered']
    #allocation6 [shape = 's32[1]{0}', space=sflag, size = 0x4, scoped, tag = 'scoped memory for tpu_custom_call.1']
    #allocation7 [shape = 'u8[4096]{0}', space=vmem, size = 0x1000, scoped, tag = 'output window, operand 0, single buffered']
    %8 = vsyncpa [#allocation3], 0
    %9 = vsyncpa [#allocation6], 0
    %10 = vsyncpa [#allocation4], 0
    // Predicated region
    $region2: #{tpu_custom_call.1} parent=1 // pred_check
      _
    $region3: #{tpu_custom_call.1} parent=1 // pred_check_branch
      %12 = sbr.rel (0) target = $region5
    $region4: #{tpu_custom_call.1} parent=1 // pred_region
      %s14 = ssub.s32 128, 128
      %15 = vsyncadd [#allocation3], %s14
      %s17 = sshll.u32 [#allocation2], 4
      %s18 = int_to_ptr.vmem [resolvable:$true] %s17
      %20 = dma.hbm_to_vmem [thread:$0]  %s0, 128, %s18, [#allocation3]
    $region5: #{tpu_custom_call.1} parent=1 // pred_fallthru
      _
    // Predicated region
    $region6: #{tpu_custom_call.1} parent=1 // pred_check
      _
    $region7: #{tpu_custom_call.1} parent=1 // pred_check_branch
      %22 = sbr.rel (0) target = $region9
    $region8: #{tpu_custom_call.1} parent=1 // pred_region
      %s24 = ssub.s32 512, 512
      %25 = vsyncadd [#allocation6], %s24
      %s26 = sshll.u32 [#allocation5], 4
      %s27 = int_to_ptr.vmem [resolvable:$true] %s26
      %32 = dma.hbm_to_vmem [thread:$0]  %s1, 512, %s27, [#allocation6], 128, 128, 8
    $region9: #{tpu_custom_call.1} parent=1 // pred_fallthru
      _
    // Predicated region
    $region10: #{tpu_custom_call.1} parent=1 // pred_check
      _
    $region11: #{tpu_custom_call.1} parent=1 // pred_check_branch
      %34 = sbr.rel (0) target = $region13
    $region12: #{tpu_custom_call.1} parent=1 // pred_region
      _
    $region13: #{tpu_custom_call.1} parent=1 // pred_fallthru
      _
    // Predicated region
    $region14: #{tpu_custom_call.1} parent=1 // pred_check
      _
    $region15: #{tpu_custom_call.1} parent=1 // pred_check_branch
      %36 = sbr.rel (0) target = $region17
    $region16: #{tpu_custom_call.1} parent=1 // pred_region
      %37 = dma.done [#allocation3], 128
    $region17: #{tpu_custom_call.1} parent=1 // pred_fallthru
      _
    // Predicated region
    $region18: #{tpu_custom_call.1} parent=1 // pred_check
      _
    $region19: #{tpu_custom_call.1} parent=1 // pred_check_branch
      %39 = sbr.rel (0) target = $region21
    $region20: #{tpu_custom_call.1} parent=1 // pred_region
      %40 = dma.done [#allocation6], 512
    $region21: #{tpu_custom_call.1} parent=1 // pred_fallthru
      _
    %v41 = vld [vmem:[#allocation2] sm:$0xff]
    %v42 = vld [vmem:[#allocation5] sm:$0xff]
    %v43 = vld [vmem:[#allocation5 + $0x8] sm:$0xff]
    %v44 = vld [vmem:[#allocation5 + $0x10] sm:$0xff]
    %v45 = vld [vmem:[#allocation5 + $0x18] sm:$0xff]
    %v46 = vld [vmem:[%s2] sm:$0x1]
    %v48 = vlaneseq
    %v49 = vshrl.u32 %v48, 7
    %v50 = vsub.s32 0, %v49
    %v51 = vrot.slane %v46, %v50
    %vm53 = vcmask 261120
    %v55 = vsel %vm53, %v41, 0
    %57 = vmatprep.subr.mxu0 0.0
    %58 = vmatpush1.msra.mxu0 0.0
    %59 = vmatprep.subr.mxu0 0.0
    %60 = vmatpush1.msra.mxu0 0.0
    %61 = vmatprep.subr.mxu0 0.0
    %62 = vmatpush1.msra.mxu0 0.0
    %63 = vmatprep.subr.mxu0 0.0
    %64 = vmatpush1.msra.mxu0 0.0
    %65 = vmatprep.subr.mxu0 0.0
    %66 = vmatpush1.msra.mxu0 0.0
    %67 = vmatprep.subr.mxu0 0.0
    %68 = vmatpush1.msra.mxu0 0.0
    %69 = vmatprep.subr.mxu0 0.0
    %70 = vmatpush1.msra.mxu0 0.0
    %71 = vmatprep.subr.mxu0 0.0
    %72 = vmatpush1.msra.mxu0 0.0
    %73 = vmatprep.subr.mxu0 0.0
    %74 = vmatpush1.msra.mxu0 0.0
    %75 = vmatprep.subr.mxu0 0.0
    %76 = vmatpush1.msra.mxu0 0.0
    %77 = vmatprep.subr.mxu0 0.0
    %78 = vmatpush1.msra.mxu0 0.0
    %79 = vmatprep.subr.mxu0 0.0
    %80 = vmatpush1.msra.mxu0 0.0
    %81 = vmatprep.subr.mxu0 0.0
    %82 = vmatpush1.msra.mxu0 %v45
    %83 = vmatprep.subr.mxu0 0.0
    %84 = vmatpush1.msra.mxu0 %v44
    %85 = vmatprep.subr.mxu0 0.0
    %86 = vmatpush1.msra.mxu0 %v43
    %87 = vmatprep.subr.mxu0 0.0
    %88 = vmatpush1.msra.mxu0 %v42
    %89 = vmatprep.subr.mxu0 0.0
    %90 = vmatpush2.msra.mxu0 0.0
    %91 = vmatprep.subr.mxu0 0.0
    %92 = vmatpush2.msra.mxu0 0.0
    %93 = vmatprep.subr.mxu0 0.0
    %94 = vmatpush2.msra.mxu0 0.0
    %95 = vmatprep.subr.mxu0 0.0
    %96 = vmatpush2.msra.mxu0 0.0
    %97 = vmatprep.subr.mxu0 0.0
    %98 = vmatpush2.msra.mxu0 0.0
    %99 = vmatprep.subr.mxu0 0.0
    %100 = vmatpush2.msra.mxu0 0.0
    %101 = vmatprep.subr.mxu0 0.0
    %102 = vmatpush2.msra.mxu0 0.0
    %103 = vmatprep.subr.mxu0 0.0
    %104 = vmatpush2.msra.mxu0 0.0
    %105 = vmatprep.subr.mxu0 0.0
    %106 = vmatpush2.msra.mxu0 0.0
    %107 = vmatprep.subr.mxu0 0.0
    %108 = vmatpush2.msra.mxu0 0.0
    %109 = vmatprep.subr.mxu0 0.0
    %110 = vmatpush2.msra.mxu0 0.0
    %111 = vmatprep.subr.mxu0 0.0
    %112 = vmatpush2.msra.mxu0 0.0
    %113 = vmatprep.subr.mxu0 0.0
    %114 = vmatpush2.msra.mxu0 0.0
    %115 = vmatprep.subr.mxu0 0.0
    %116 = vmatpush2.msra.mxu0 0.0
    %117 = vmatprep.subr.mxu0 0.0
    %118 = vmatpush2.msra.mxu0 0.0
    %119 = vmatprep.subr.mxu0 0.0
    %120 = vmatpush2.msra.mxu0 0.0
    %121 = vmatprep.mubr.f32.mxu0 0.0
    %122 = vmatmul.mubr.f32.gmra.mxu0 %v55
    %v123 = vpop.f32.mrf.mxu0
    %v124 = vadd.f32 %v51, %v123
    %v125 = vpop.f32.mrf.mxu0
    %126 = vdwg.mxu0
    %v127 = vmax.f32 %v124, 0.0
    %128 = vst [vmem:[#allocation7] sm:$0xff] %v127
    // Predicated region
    $region22: #{tpu_custom_call.1} parent=1 // pred_check
      _
    $region23: #{tpu_custom_call.1} parent=1 // pred_check_branch
      %130 = sbr.rel (0) target = $region25
    $region24: #{tpu_custom_call.1} parent=1 // pred_region
      %s132 = ssub.s32 128, 128
      %133 = vsyncadd [#allocation4], %s132
      %s135 = sshll.u32 [#allocation7], 4
      %s136 = int_to_ptr.vmem [resolvable:$true] %s135
      %138 = dma.vmem_to_hbm [thread:$0]  %s136, 128, %s3, [#allocation4]
    $region25: #{tpu_custom_call.1} parent=1 // pred_fallthru
      _
    // Predicated region
    $region26: #{tpu_custom_call.1} parent=1 // pred_check
      _
    $region27: #{tpu_custom_call.1} parent=1 // pred_check_branch
      %140 = sbr.rel (0) target = $region29
    $region28: #{tpu_custom_call.1} parent=1 // pred_region
      %141 = dma.done [#allocation4], 128
    $region29: #{tpu_custom_call.1} parent=1 // pred_fallthru
      _
    %142 = vsyncpa [#allocation3], 1
    %143 = vsyncpa [#allocation6], 1
    %144 = vsyncpa [#allocation4], 1

</llo_original>
